<compile_context>
chip_gen: v5e
topology: v5e:2x2
jax: 0.10.0
libtpu: 0.0.40
codegen_flags: <defaults>
</compile_context>

<pallas_src>
import functools
import math

import jax
import jax.numpy as jnp
from jax.experimental import pallas as pl
from jax.experimental.pallas import tpu as pltpu


def _cross_attention_kernel(x_ref, enc_ref, *refs, bb, tt, st, H, E_out, fuse_kv):
    if fuse_kv:
        (wq_ref, wkv_ref, wp_ref, bq_ref, bkv_ref, bp_ref,
         o_ref, q_scr, m_scr, l_scr, acc_scr) = refs
    else:
        (wq_ref, wk_ref, wv_ref, wp_ref, bq_ref, bk_ref, bv_ref, bp_ref,
         o_ref, q_scr, m_scr, l_scr, acc_scr) = refs

    j = pl.program_id(2)
    scale = H ** (-0.5)

    # --- init: compute (scaled) q once per (batch block, T block); reset stats.
    @pl.when(j == 0)
    def _init():
        x2 = x_ref[...].reshape(bb * tt, -1)                       # (bb*tt, E)
        q = jnp.dot(x2, wq_ref[...], preferred_element_type=jnp.float32)
        q = (q + bq_ref[...]) * scale                              # scale q, not scores
        q_scr[...] = q.reshape(bb, tt, H)
        m_scr[...] = jnp.full((bb, tt, 1), -jnp.inf, jnp.float32)
        l_scr[...] = jnp.zeros((bb, tt, 1), jnp.float32)
        acc_scr[...] = jnp.zeros((bb, tt, H), jnp.float32)

    # --- K/V projection for this S tile (native-dtype MXU, f32 accumulate).
    enc2 = enc_ref[...].reshape(bb * st, -1)                       # (bb*st, E)
    if fuse_kv:  # H % 128 == 0: lane-aligned slices of one wide matmul
        kv = jnp.dot(enc2, wkv_ref[...], preferred_element_type=jnp.float32) + bkv_ref[...]
        k = kv[:, :H]
        v = kv[:, H:]
    else:        # small / unaligned H: two dots, no cross-lane relayout
        k = jnp.dot(enc2, wk_ref[...], preferred_element_type=jnp.float32) + bk_ref[...]
        v = jnp.dot(enc2, wv_ref[...], preferred_element_type=jnp.float32) + bv_ref[...]
    kb = k.reshape(bb, st, H)
    vb = v.reshape(bb, st, H)

    # --- online softmax over the S axis (batched contractions, no k.T).
    qb = q_scr[...]                                                # (bb, tt, H) f32
    s = jnp.einsum("bth,bsh->bts", qb, kb,
                   preferred_element_type=jnp.float32)             # (bb, tt, st)

    m_prev = m_scr[...]
    m_new = jnp.maximum(m_prev, jnp.max(s, axis=-1, keepdims=True))
    alpha = jnp.exp(m_prev - m_new)
    p = jnp.exp(s - m_new)
    l_scr[...] = alpha * l_scr[...] + jnp.sum(p, axis=-1, keepdims=True)
    acc_scr[...] = alpha * acc_scr[...] + jnp.einsum(
        "bts,bsh->bth", p, vb, preferred_element_type=jnp.float32)
    m_scr[...] = m_new

    # dropout with p = config.dropout = 0.0 -> identity

    # --- finalize: normalize, output projection, lane-dense store.
    @pl.when(j == pl.num_programs(2) - 1)
    def _finalize():
        o = acc_scr[...] * pl.reciprocal(l_scr[...], approx=True)  # (bb, tt, H)
        y = jnp.dot(o.reshape(bb * tt, H), wp_ref[...],
                    preferred_element_type=jnp.float32) + bp_ref[...]  # (bb*tt, E_out)
        o_ref[...] = y.reshape(bb, tt, E_out).astype(o_ref.dtype)


def _pick_tiles(B, T, S, E, E_out, H, itemsize, budget_bytes,
                rows_target=1024, s_target=512):
    """Pick (batch block bb, T block tt, S tile st) under a VMEM byte budget."""
    pack = 32 // itemsize  # sublane pack: 8 (f32), 16 (bf16), 32 (int8)

    def legal(n):
        return [d for d in range(1, n + 1) if n % d == 0 and (d % pack == 0 or d == n)]

    s_divs, t_divs = legal(S), legal(T)
    b_divs = [d for d in range(1, B + 1) if B % d == 0]

    def vmem(bb, tt, st):
        w = (3 * E * H + H * E_out + 3 * H + E_out) * itemsize        # single-buffered weights
        io = 2 * itemsize * (bb * tt * E + bb * st * E + bb * tt * E_out)  # double-buffered blocks
        scr = 4 * bb * tt * (2 * H + 2)                               # q/acc/m/l f32 scratch
        tmp = 4 * (bb * st * 2 * H + 2 * bb * tt * st)                # k/v + score/prob f32 temps
        return w + io + scr + tmp

    st = max([d for d in s_divs if d <= s_target] or [min(s_divs)])
    while vmem(1, min(t_divs), st) > budget_bytes:
        smaller = [d for d in s_divs if d < st]
        if not smaller:
            break
        st = max(smaller)

    best = None
    for bb in b_divs:
        for tt in t_divs:
            if bb * tt > rows_target or vmem(bb, tt, st) > budget_bytes:
                continue
            n_par = (B // bb) * (T // tt)            # parallel steps (feed 2 TCs on v7x)
            key = (n_par >= 2, bb * tt, bb)
            if best is None or key > best[0]:
                best = (key, bb, tt)
    if best is None:
        bb = 1
        fitting = [d for d in t_divs if vmem(1, d, st) <= budget_bytes]
        tt = max(fitting) if fitting else min(t_divs)
    else:
        bb, tt = best[1], best[2]
    return bb, tt, st


def _weight_spec(shape):
    """Full-array spec; single-buffered (block index never changes)."""
    idx = lambda i, t, j: (0,) * len(shape)
    try:
        return pl.BlockSpec(shape, idx, pipeline_mode=pl.Buffered(1))
    except TypeError:  # older BlockSpec without pipeline_mode
        return pl.BlockSpec(shape, idx)


def cross_attention(x, encoder_out, params, *, rows_target=1024, s_target=512):
    """x: (B, T, E), encoder_out: (B, S, E) -> (B, T, E)."""
    B, T, E = x.shape
    _, S, _ = encoder_out.shape
    wq, wk, wv, wp = params["wq"], params["wk"], params["wv"], params["wp"]
    bq, bk, bv, bp = params["bq"], params["bk"], params["bv"], params["bp"]
    H = wq.shape[1]
    dtype = x.dtype
    itemsize = jnp.dtype(dtype).itemsize

    # lane-dense output: pad the output-projection features to a 128 multiple
    E_out = -(-E // 128) * 128
    if E_out != E:
        wp = jnp.pad(wp, ((0, 0), (0, E_out - E)))
        bp = jnp.pad(bp, ((0, 0), (0, E_out - E)))

    # per-generation VMEM budget (v7x: 64 MiB, v5e/v6e: 128 MiB physical)
    try:
        vmem_cap = int(pltpu.get_tpu_info().vmem_capacity_bytes)
    except Exception:
        vmem_cap = 64 << 20  # conservative (v7x per-TC)
    vmem_limit = min(int(vmem_cap * 0.75), 96 << 20)
    budget = int(vmem_limit * 0.8)

    bb, tt, st = _pick_tiles(B, T, S, E, E_out, H, itemsize, budget,
                             rows_target=rows_target, s_target=s_target)
    grid = (B // bb, T // tt, S // st)

    fuse_kv = (H % 128 == 0)  # only fuse K|V when the slice is lane-aligned
    in_specs = [
        pl.BlockSpec((bb, tt, E), lambda i, t, j: (i, t, 0)),   # decoder block
        pl.BlockSpec((bb, st, E), lambda i, t, j: (i, j, 0)),   # encoder S tile
        _weight_spec((E, H)),                                   # wq
    ]
    operands = [x, encoder_out, wq]
    if fuse_kv:
        wkv = jnp.concatenate([wk, wv], axis=1)                 # (E, 2H)
        bkv = jnp.concatenate([bk, bv], axis=1)                 # (1, 2H)
        in_specs += [_weight_spec((E, 2 * H)), _weight_spec((H, E_out)),
                     _weight_spec((1, H)), _weight_spec((1, 2 * H)),
                     _weight_spec((1, E_out))]
        operands += [wkv, wp, bq, bkv, bp]
    else:
        in_specs += [_weight_spec((E, H)), _weight_spec((E, H)),
                     _weight_spec((H, E_out)),
                     _weight_spec((1, H)), _weight_spec((1, H)),
                     _weight_spec((1, H)), _weight_spec((1, E_out))]
        operands += [wk, wv, wp, bq, bk, bv, bp]

    out_spec = pl.BlockSpec((bb, tt, E_out), lambda i, t, j: (i, t, 0))

    kernel = functools.partial(_cross_attention_kernel, bb=bb, tt=tt, st=st,
                               H=H, E_out=E_out, fuse_kv=fuse_kv)

    flops = 2 * B * (T * E * H + 2 * S * E * H + 2 * T * S * H + T * H * E_out)
    bytes_accessed = itemsize * (B * T * E + B * S * E + B * T * E_out
                                 + 3 * E * H + H * E_out + 3 * H + E_out)
    cost = pl.CostEstimate(flops=flops, transcendentals=B * T * S,
                           bytes_accessed=bytes_accessed)

    out = pl.pallas_call(
        kernel,
        out_shape=jax.ShapeDtypeStruct((B, T, E_out), dtype),
        grid_spec=pltpu.PrefetchScalarGridSpec(
            num_scalar_prefetch=0,
            grid=grid,
            in_specs=in_specs,
            out_specs=out_spec,
            scratch_shapes=[
                pltpu.VMEM((bb, tt, H), jnp.float32),   # q (scaled)
                pltpu.VMEM((bb, tt, 1), jnp.float32),   # running max
                pltpu.VMEM((bb, tt, 1), jnp.float32),   # running denom
                pltpu.VMEM((bb, tt, H), jnp.float32),   # output accumulator
            ],
        ),
        compiler_params=pltpu.CompilerParams(
            dimension_semantics=("parallel", "parallel", "arbitrary"),
            vmem_limit_bytes=vmem_limit),
        cost_estimate=cost,
    )(*operands)

    return out[..., :E] if E_out != E else out


def cross_attention_ref(x, encoder_out, params):
    """Pure-JAX reference mirroring the PyTorch forward."""
    q = x @ params["wq"] + params["bq"][0]
    k = encoder_out @ params["wk"] + params["bk"][0]
    v = encoder_out @ params["wv"] + params["bv"][0]
    s = jnp.einsum("bth,bsh->bts", q, k) * (q.shape[-1] ** -0.5)
    p = jax.nn.softmax(s, axis=-1)
    out = jnp.einsum("bts,bsh->bth", p, v)
    return out @ params["wp"] + params["bp"][0]


def init_params(key, n_embd, head_size, dtype=jnp.float32):
    """Deterministic init matching the nn.Linear shapes (config.bias=True)."""
    ks = jax.random.split(key, 8)
    lim_e = 1.0 / math.sqrt(n_embd)
    lim_h = 1.0 / math.sqrt(head_size)
    u = lambda k, shape, lim: jax.random.uniform(k, shape, dtype, -lim, lim)
    return {
        "wq": u(ks[0], (n_embd, head_size), lim_e),
        "wk": u(ks[1], (n_embd, head_size), lim_e),
        "wv": u(ks[2], (n_embd, head_size), lim_e),
        "wp": u(ks[3], (head_size, n_embd), lim_h),
        "bq": u(ks[4], (1, head_size), lim_e),
        "bk": u(ks[5], (1, head_size), lim_e),
        "bv": u(ks[6], (1, head_size), lim_e),
        "bp": u(ks[7], (1, n_embd), lim_h),
    }


if __name__ == "__main__":
    B, T, S, E, H = 2, 8, 8, 32, 16  # batch, dec seq, enc seq, n_embd, head_size

    key = jax.random.PRNGKey(0)
    kx, kenc, kp = jax.random.split(key, 3)
    x = jax.random.normal(kx, (B, T, E), jnp.float32)
    encoder_out = jax.random.normal(kenc, (B, S, E), jnp.float32)
    params = init_params(kp, E, H)

    out = jax.block_until_ready(cross_attention(x, encoder_out, params))
    ref = cross_attention_ref(x, encoder_out, params)

    assert out.shape == (B, T, E)
    # slightly relaxed tolerance: approx (EUP) reciprocal in the softmax denom
    assert jnp.allclose(out, ref, atol=2e-3, rtol=2e-3), "mismatch vs reference"

    print("KERNEL_OK")
</pallas_src>

<mosaic_0001>
module attributes {stable_mosaic.version = 11 : i64} {
  func.func @_cross_attention_kernel(%arg0: i32, %arg1: i32, %arg2: i32, %arg3: memref<1x8x32xf32, #tpu.memory_space<vmem>>, %arg4: memref<1x8x32xf32, #tpu.memory_space<vmem>>, %arg5: memref<32x16xf32, #tpu.memory_space<vmem>>, %arg6: memref<32x16xf32, #tpu.memory_space<vmem>>, %arg7: memref<32x16xf32, #tpu.memory_space<vmem>>, %arg8: memref<16x128xf32, #tpu.memory_space<vmem>>, %arg9: memref<1x16xf32, #tpu.memory_space<vmem>>, %arg10: memref<1x16xf32, #tpu.memory_space<vmem>>, %arg11: memref<1x16xf32, #tpu.memory_space<vmem>>, %arg12: memref<1x128xf32, #tpu.memory_space<vmem>>, %arg13: memref<1x8x128xf32, #tpu.memory_space<vmem>>, %arg14: memref<1x8x16xf32, #tpu.memory_space<vmem>>, %arg15: memref<1x8x1xf32, #tpu.memory_space<vmem>>, %arg16: memref<1x8x1xf32, #tpu.memory_space<vmem>>, %arg17: memref<1x8x16xf32, #tpu.memory_space<vmem>>) attributes {dimension_semantics = [#tpu.dimension_semantics<parallel>, #tpu.dimension_semantics<parallel>, #tpu.dimension_semantics<arbitrary>], iteration_bounds = array<i64: 2, 1, 1>, scalar_prefetch = 0 : i64, scratch_operands = 4 : i64, tpu.core_type = #tpu.core_type<tc>, window_params = [{transform_indices = @transform_0, window_bounds = array<i64: 1, 8, 32>}, {transform_indices = @transform_1, window_bounds = array<i64: 1, 8, 32>}, {pipeline_mode = #tpu.pipeline_mode<synchronous>, transform_indices = @transform_2, window_bounds = array<i64: 32, 16>}, {pipeline_mode = #tpu.pipeline_mode<synchronous>, transform_indices = @transform_3, window_bounds = array<i64: 32, 16>}, {pipeline_mode = #tpu.pipeline_mode<synchronous>, transform_indices = @transform_4, window_bounds = array<i64: 32, 16>}, {pipeline_mode = #tpu.pipeline_mode<synchronous>, transform_indices = @transform_5, window_bounds = array<i64: 16, 128>}, {pipeline_mode = #tpu.pipeline_mode<synchronous>, transform_indices = @transform_6, window_bounds = array<i64: 1, 16>}, {pipeline_mode = #tpu.pipeline_mode<synchronous>, transform_indices = @transform_7, window_bounds = array<i64: 1, 16>}, {pipeline_mode = #tpu.pipeline_mode<synchronous>, transform_indices = @transform_8, window_bounds = array<i64: 1, 16>}, {pipeline_mode = #tpu.pipeline_mode<synchronous>, transform_indices = @transform_9, window_bounds = array<i64: 1, 128>}, {transform_indices = @transform_10, window_bounds = array<i64: 1, 8, 128>}]} {
    %c0_i32 = arith.constant 0 : i32
    %0 = arith.cmpi eq, %arg2, %c0_i32 : i32
    %1 = arith.extui %0 : i1 to i32
    %c0_i32_0 = arith.constant 0 : i32
    %2 = arith.cmpi ne, %1, %c0_i32_0 : i32
    scf.if %2 {
      %c0_39 = arith.constant 0 : index
      %c0_40 = arith.constant 0 : index
      %c0_41 = arith.constant 0 : index
      %44 = vector.load %arg3[%c0_39, %c0_40, %c0_41] : memref<1x8x32xf32, #tpu.memory_space<vmem>>, vector<1x8x32xf32>
      %45 = vector.shape_cast %44 : vector<1x8x32xf32> to vector<8x32xf32>
      %c0_42 = arith.constant 0 : index
      %c0_43 = arith.constant 0 : index
      %46 = vector.load %arg5[%c0_42, %c0_43] : memref<32x16xf32, #tpu.memory_space<vmem>>, vector<32x16xf32>
      %cst_44 = arith.constant dense<0.000000e+00> : vector<8x16xf32>
      %47 = tpu.matmul %45, %46, %cst_44 {dimension_numbers = #tpu.dot_dimension_numbers<[1], [0], [0], [1], [0, 0, 1, 1], [], []>} : vector<8x32xf32>, vector<32x16xf32>, vector<8x16xf32> -> vector<8x16xf32>
      %c0_45 = arith.constant 0 : index
      %c0_46 = arith.constant 0 : index
      %48 = vector.load %arg9[%c0_45, %c0_46] : memref<1x16xf32, #tpu.memory_space<vmem>>, vector<1x16xf32>
      %49 = vector.broadcast %48 : vector<1x16xf32> to vector<8x16xf32>
      %50 = arith.addf %47, %49 : vector<8x16xf32>
      %cst_47 = arith.constant 2.500000e-01 : f32
      %51 = vector.broadcast %cst_47 : f32 to vector<8x16xf32>
      %52 = arith.mulf %50, %51 : vector<8x16xf32>
      %53 = vector.shape_cast %52 : vector<8x16xf32> to vector<1x8x16xf32>
      %c0_48 = arith.constant 0 : index
      %c0_49 = arith.constant 0 : index
      %c0_50 = arith.constant 0 : index
      %54 = vector.load %arg14[%c0_48, %c0_49, %c0_50] : memref<1x8x16xf32, #tpu.memory_space<vmem>>, vector<1x8x16xf32>
      tpu.vector_store %arg14[%c0_48, %c0_49, %c0_50], %53 {strides = array<i32>} : memref<1x8x16xf32, #tpu.memory_space<vmem>>, vector<1x8x16xf32>,
      %cst_51 = arith.constant 0xFF800000 : f32
      %55 = vector.broadcast %cst_51 : f32 to vector<1x8x1xf32>
      %c0_52 = arith.constant 0 : index
      %c0_53 = arith.constant 0 : index
      %c0_54 = arith.constant 0 : index
      %56 = vector.load %arg15[%c0_52, %c0_53, %c0_54] : memref<1x8x1xf32, #tpu.memory_space<vmem>>, vector<1x8x1xf32>
      tpu.vector_store %arg15[%c0_52, %c0_53, %c0_54], %55 {strides = array<i32>} : memref<1x8x1xf32, #tpu.memory_space<vmem>>, vector<1x8x1xf32>,
      %cst_55 = arith.constant 0.000000e+00 : f32
      %57 = vector.broadcast %cst_55 : f32 to vector<1x8x1xf32>
      %c0_56 = arith.constant 0 : index
      %c0_57 = arith.constant 0 : index
      %c0_58 = arith.constant 0 : index
      %58 = vector.load %arg16[%c0_56, %c0_57, %c0_58] : memref<1x8x1xf32, #tpu.memory_space<vmem>>, vector<1x8x1xf32>
      tpu.vector_store %arg16[%c0_56, %c0_57, %c0_58], %57 {strides = array<i32>} : memref<1x8x1xf32, #tpu.memory_space<vmem>>, vector<1x8x1xf32>,
      %cst_59 = arith.constant 0.000000e+00 : f32
      %59 = vector.broadcast %cst_59 : f32 to vector<1x8x16xf32>
      %c0_60 = arith.constant 0 : index
      %c0_61 = arith.constant 0 : index
      %c0_62 = arith.constant 0 : index
      %60 = vector.load %arg17[%c0_60, %c0_61, %c0_62] : memref<1x8x16xf32, #tpu.memory_space<vmem>>, vector<1x8x16xf32>
      tpu.vector_store %arg17[%c0_60, %c0_61, %c0_62], %59 {strides = array<i32>} : memref<1x8x16xf32, #tpu.memory_space<vmem>>, vector<1x8x16xf32>,
    } else {
    }
    %c0 = arith.constant 0 : index
    %c0_1 = arith.constant 0 : index
    %c0_2 = arith.constant 0 : index
    %3 = vector.load %arg4[%c0, %c0_1, %c0_2] : memref<1x8x32xf32, #tpu.memory_space<vmem>>, vector<1x8x32xf32>
    %4 = vector.shape_cast %3 : vector<1x8x32xf32> to vector<8x32xf32>
    %c0_3 = arith.constant 0 : index
    %c0_4 = arith.constant 0 : index
    %5 = vector.load %arg6[%c0_3, %c0_4] : memref<32x16xf32, #tpu.memory_space<vmem>>, vector<32x16xf32>
    %cst = arith.constant dense<0.000000e+00> : vector<8x16xf32>
    %6 = tpu.matmul %4, %5, %cst {dimension_numbers = #tpu.dot_dimension_numbers<[1], [0], [0], [1], [0, 0, 1, 1], [], []>} : vector<8x32xf32>, vector<32x16xf32>, vector<8x16xf32> -> vector<8x16xf32>
    %c0_5 = arith.constant 0 : index
    %c0_6 = arith.constant 0 : index
    %7 = vector.load %arg10[%c0_5, %c0_6] : memref<1x16xf32, #tpu.memory_space<vmem>>, vector<1x16xf32>
    %8 = vector.broadcast %7 : vector<1x16xf32> to vector<8x16xf32>
    %9 = arith.addf %6, %8 : vector<8x16xf32>
    %c0_7 = arith.constant 0 : index
    %c0_8 = arith.constant 0 : index
    %10 = vector.load %arg7[%c0_7, %c0_8] : memref<32x16xf32, #tpu.memory_space<vmem>>, vector<32x16xf32>
    %cst_9 = arith.constant dense<0.000000e+00> : vector<8x16xf32>
    %11 = tpu.matmul %4, %10, %cst_9 {dimension_numbers = #tpu.dot_dimension_numbers<[1], [0], [0], [1], [0, 0, 1, 1], [], []>} : vector<8x32xf32>, vector<32x16xf32>, vector<8x16xf32> -> vector<8x16xf32>
    %c0_10 = arith.constant 0 : index
    %c0_11 = arith.constant 0 : index
    %12 = vector.load %arg11[%c0_10, %c0_11] : memref<1x16xf32, #tpu.memory_space<vmem>>, vector<1x16xf32>
    %13 = vector.broadcast %12 : vector<1x16xf32> to vector<8x16xf32>
    %14 = arith.addf %11, %13 : vector<8x16xf32>
    %15 = vector.shape_cast %9 : vector<8x16xf32> to vector<1x8x16xf32>
    %16 = vector.shape_cast %14 : vector<8x16xf32> to vector<1x8x16xf32>
    %c0_12 = arith.constant 0 : index
    %c0_13 = arith.constant 0 : index
    %c0_14 = arith.constant 0 : index
    %17 = vector.load %arg14[%c0_12, %c0_13, %c0_14] : memref<1x8x16xf32, #tpu.memory_space<vmem>>, vector<1x8x16xf32>
    "tpu.trace_start"() <{level = 10 : i32, message = "bth,bsh->bts"}> : () -> ()
    %cst_15 = arith.constant dense<0.000000e+00> : vector<1x8x8xf32>
    %18 = tpu.matmul %17, %15, %cst_15 {dimension_numbers = #tpu.dot_dimension_numbers<[2], [2], [1], [1], [0, 0, 0, 1, 1, 1], [0], [0]>} : vector<1x8x16xf32>, vector<1x8x16xf32>, vector<1x8x8xf32> -> vector<1x8x8xf32>
    "tpu.trace_stop"() : () -> ()
    %c0_16 = arith.constant 0 : index
    %c0_17 = arith.constant 0 : index
    %c0_18 = arith.constant 0 : index
    %19 = vector.load %arg15[%c0_16, %c0_17, %c0_18] : memref<1x8x1xf32, #tpu.memory_space<vmem>>, vector<1x8x1xf32>
    %cst_19 = arith.constant dense<0xFF800000> : vector<1x8xf32>
    %20 = vector.multi_reduction <maximumf>, %18, %cst_19 [2] : vector<1x8x8xf32> to vector<1x8xf32>
    %21 = vector.shape_cast %20 : vector<1x8xf32> to vector<1x8x1xf32>
    %22 = arith.maximumf %19, %21 : vector<1x8x1xf32>
    %23 = arith.subf %19, %22 : vector<1x8x1xf32>
    %24 = math.exp %23 : vector<1x8x1xf32>
    %25 = vector.broadcast %22 : vector<1x8x1xf32> to vector<1x8x8xf32>
    %26 = arith.subf %18, %25 : vector<1x8x8xf32>
    %27 = math.exp %26 : vector<1x8x8xf32>
    %c0_20 = arith.constant 0 : index
    %c0_21 = arith.constant 0 : index
    %c0_22 = arith.constant 0 : index
    %28 = vector.load %arg16[%c0_20, %c0_21, %c0_22] : memref<1x8x1xf32, #tpu.memory_space<vmem>>, vector<1x8x1xf32>
    %29 = arith.mulf %24, %28 : vector<1x8x1xf32>
    %cst_23 = arith.constant dense<0.000000e+00> : vector<1x8xf32>
    %30 = vector.multi_reduction <add>, %27, %cst_23 [2] : vector<1x8x8xf32> to vector<1x8xf32>
    %31 = vector.shape_cast %30 : vector<1x8xf32> to vector<1x8x1xf32>
    %32 = arith.addf %29, %31 : vector<1x8x1xf32>
    %c0_24 = arith.constant 0 : index
    %c0_25 = arith.constant 0 : index
    %c0_26 = arith.constant 0 : index
    %33 = vector.load %arg16[%c0_24, %c0_25, %c0_26] : memref<1x8x1xf32, #tpu.memory_space<vmem>>, vector<1x8x1xf32>
    tpu.vector_store %arg16[%c0_24, %c0_25, %c0_26], %32 {strides = array<i32>} : memref<1x8x1xf32, #tpu.memory_space<vmem>>, vector<1x8x1xf32>,
    %c0_27 = arith.constant 0 : index
    %c0_28 = arith.constant 0 : index
    %c0_29 = arith.constant 0 : index
    %34 = vector.load %arg17[%c0_27, %c0_28, %c0_29] : memref<1x8x16xf32, #tpu.memory_space<vmem>>, vector<1x8x16xf32>
    %35 = vector.broadcast %24 : vector<1x8x1xf32> to vector<1x8x16xf32>
    %36 = arith.mulf %35, %34 : vector<1x8x16xf32>
    "tpu.trace_start"() <{level = 10 : i32, message = "bts,bsh->bth"}> : () -> ()
    %cst_30 = arith.constant dense<0.000000e+00> : vector<1x8x16xf32>
    %37 = tpu.matmul %27, %16, %cst_30 {dimension_numbers = #tpu.dot_dimension_numbers<[2], [1], [1], [2], [0, 0, 0, 1, 1, 2], [0], [0]>} : vector<1x8x8xf32>, vector<1x8x16xf32>, vector<1x8x16xf32> -> vector<1x8x16xf32>
    "tpu.trace_stop"() : () -> ()
    %38 = arith.addf %36, %37 : vector<1x8x16xf32>
    %c0_31 = arith.constant 0 : index
    %c0_32 = arith.constant 0 : index
    %c0_33 = arith.constant 0 : index
    %39 = vector.load %arg17[%c0_31, %c0_32, %c0_33] : memref<1x8x16xf32, #tpu.memory_space<vmem>>, vector<1x8x16xf32>
    tpu.vector_store %arg17[%c0_31, %c0_32, %c0_33], %38 {strides = array<i32>} : memref<1x8x16xf32, #tpu.memory_space<vmem>>, vector<1x8x16xf32>,
    %c0_34 = arith.constant 0 : index
    %c0_35 = arith.constant 0 : index
    %c0_36 = arith.constant 0 : index
    %40 = vector.load %arg15[%c0_34, %c0_35, %c0_36] : memref<1x8x1xf32, #tpu.memory_space<vmem>>, vector<1x8x1xf32>
    tpu.vector_store %arg15[%c0_34, %c0_35, %c0_36], %22 {strides = array<i32>} : memref<1x8x1xf32, #tpu.memory_space<vmem>>, vector<1x8x1xf32>,
    %c0_i32_37 = arith.constant 0 : i32
    %41 = arith.cmpi eq, %arg2, %c0_i32_37 : i32
    %42 = arith.extui %41 : i1 to i32
    %c0_i32_38 = arith.constant 0 : i32
    %43 = arith.cmpi ne, %42, %c0_i32_38 : i32
    scf.if %43 {
      %c0_39 = arith.constant 0 : index
      %c0_40 = arith.constant 0 : index
      %c0_41 = arith.constant 0 : index
      %44 = vector.load %arg17[%c0_39, %c0_40, %c0_41] : memref<1x8x16xf32, #tpu.memory_space<vmem>>, vector<1x8x16xf32>
      %c0_42 = arith.constant 0 : index
      %c0_43 = arith.constant 0 : index
      %c0_44 = arith.constant 0 : index
      %45 = vector.load %arg16[%c0_42, %c0_43, %c0_44] : memref<1x8x1xf32, #tpu.memory_space<vmem>>, vector<1x8x1xf32>
      %46 = tpu.reciprocal %45 {approx = true} : vector<1x8x1xf32> -> vector<1x8x1xf32>
      %47 = vector.broadcast %46 : vector<1x8x1xf32> to vector<1x8x16xf32>
      %48 = arith.mulf %44, %47 : vector<1x8x16xf32>
      %49 = vector.shape_cast %48 : vector<1x8x16xf32> to vector<8x16xf32>
      %c0_45 = arith.constant 0 : index
      %c0_46 = arith.constant 0 : index
      %50 = vector.load %arg8[%c0_45, %c0_46] : memref<16x128xf32, #tpu.memory_space<vmem>>, vector<16x128xf32>
      %cst_47 = arith.constant dense<0.000000e+00> : vector<8x128xf32>
      %51 = tpu.matmul %49, %50, %cst_47 {dimension_numbers = #tpu.dot_dimension_numbers<[1], [0], [0], [1], [0, 0, 1, 1], [], []>} : vector<8x16xf32>, vector<16x128xf32>, vector<8x128xf32> -> vector<8x128xf32>
      %c0_48 = arith.constant 0 : index
      %c0_49 = arith.constant 0 : index
      %52 = vector.load %arg12[%c0_48, %c0_49] : memref<1x128xf32, #tpu.memory_space<vmem>>, vector<1x128xf32>
      %53 = vector.broadcast %52 : vector<1x128xf32> to vector<8x128xf32>
      %54 = arith.addf %51, %53 : vector<8x128xf32>
      %55 = vector.shape_cast %54 : vector<8x128xf32> to vector<1x8x128xf32>
      %c0_50 = arith.constant 0 : index
      %c0_51 = arith.constant 0 : index
      %c0_52 = arith.constant 0 : index
      %56 = vector.load %arg13[%c0_50, %c0_51, %c0_52] : memref<1x8x128xf32, #tpu.memory_space<vmem>>, vector<1x8x128xf32>
      tpu.vector_store %arg13[%c0_50, %c0_51, %c0_52], %55 {strides = array<i32>} : memref<1x8x128xf32, #tpu.memory_space<vmem>>, vector<1x8x128xf32>,
    } else {
    }
    return
  }
  func.func @transform_0(%arg0: i32, %arg1: i32, %arg2: i32) -> (i32, i32, i32) {
    %c0_i32 = arith.constant 0 : i32
    %c0_i32_0 = arith.constant 0 : i32
    return %arg0, %arg1, %c0_i32 : i32, i32, i32
  }
  func.func @transform_1(%arg0: i32, %arg1: i32, %arg2: i32) -> (i32, i32, i32) {
    %c0_i32 = arith.constant 0 : i32
    %c0_i32_0 = arith.constant 0 : i32
    return %arg0, %arg2, %c0_i32 : i32, i32, i32
  }
  func.func @transform_2(%arg0: i32, %arg1: i32, %arg2: i32) -> (i32, i32) {
    %c0_i32 = arith.constant 0 : i32
    %c0_i32_0 = arith.constant 0 : i32
    %c0_i32_1 = arith.constant 0 : i32
    return %c0_i32, %c0_i32_0 : i32, i32
  }
  func.func @transform_3(%arg0: i32, %arg1: i32, %arg2: i32) -> (i32, i32) {
    %c0_i32 = arith.constant 0 : i32
    %c0_i32_0 = arith.constant 0 : i32
    %c0_i32_1 = arith.constant 0 : i32
    return %c0_i32, %c0_i32_0 : i32, i32
  }
  func.func @transform_4(%arg0: i32, %arg1: i32, %arg2: i32) -> (i32, i32) {
    %c0_i32 = arith.constant 0 : i32
    %c0_i32_0 = arith.constant 0 : i32
    %c0_i32_1 = arith.constant 0 : i32
    return %c0_i32, %c0_i32_0 : i32, i32
  }
  func.func @transform_5(%arg0: i32, %arg1: i32, %arg2: i32) -> (i32, i32) {
    %c0_i32 = arith.constant 0 : i32
    %c0_i32_0 = arith.constant 0 : i32
    %c0_i32_1 = arith.constant 0 : i32
    return %c0_i32, %c0_i32_0 : i32, i32
  }
  func.func @transform_6(%arg0: i32, %arg1: i32, %arg2: i32) -> (i32, i32) {
    %c0_i32 = arith.constant 0 : i32
    %c0_i32_0 = arith.constant 0 : i32
    %c0_i32_1 = arith.constant 0 : i32
    return %c0_i32, %c0_i32_0 : i32, i32
  }
  func.func @transform_7(%arg0: i32, %arg1: i32, %arg2: i32) -> (i32, i32) {
    %c0_i32 = arith.constant 0 : i32
    %c0_i32_0 = arith.constant 0 : i32
    %c0_i32_1 = arith.constant 0 : i32
    return %c0_i32, %c0_i32_0 : i32, i32
  }
  func.func @transform_8(%arg0: i32, %arg1: i32, %arg2: i32) -> (i32, i32) {
    %c0_i32 = arith.constant 0 : i32
    %c0_i32_0 = arith.constant 0 : i32
    %c0_i32_1 = arith.constant 0 : i32
    return %c0_i32, %c0_i32_0 : i32, i32
  }
  func.func @transform_9(%arg0: i32, %arg1: i32, %arg2: i32) -> (i32, i32) {
    %c0_i32 = arith.constant 0 : i32
    %c0_i32_0 = arith.constant 0 : i32
    %c0_i32_1 = arith.constant 0 : i32
    return %c0_i32, %c0_i32_0 : i32, i32
  }
  func.func @transform_10(%arg0: i32, %arg1: i32, %arg2: i32) -> (i32, i32, i32) {
    %c0_i32 = arith.constant 0 : i32
    %c0_i32_0 = arith.constant 0 : i32
    return %arg0, %arg1, %c0_i32 : i32, i32, i32
  }
}

</mosaic_0001>

<llo_original>
// kernel: tpu_custom_call.1
$region0: #{tpu_custom_call.1}
  #allocation0 [shape = 'u32[]', space=smem, size = 0x4, offset = 0x4, fixed_abs, tag = 'smem constant byte address 0x4 - core index']
  #allocation1 [shape = 'u32[72,128]{1,0:T(1,128)}', space=vmem, size = 0x9000, scoped, tag = 'internal scratch']
  #allocation2 [shape = 'f32[1,8,16]{2,1,0:T(8,128)}', space=vmem, size = 0x1000, scoped, tag = 'scratch operand']
  #allocation3 [shape = 'f32[1,8,1]{2,1,0:T(8,128)}', space=vmem, size = 0x1000, scoped, tag = 'scratch operand']
  #allocation4 [shape = 'f32[1,8,1]{2,1,0:T(8,128)}', space=vmem, size = 0x1000, scoped, tag = 'scratch operand']
  #allocation5 [shape = 'f32[1,8,16]{2,1,0:T(8,128)}', space=vmem, size = 0x1000, scoped, tag = 'scratch operand']
  %s0 = inlined_call_operand.vmem [shape: f32[2,8,32], index: 0, kind: input, shape index: {}]
  %s1 = inlined_call_operand.vmem [shape: f32[2,8,32], index: 1, kind: input, shape index: {}]
  %s2 = inlined_call_operand.vmem [shape: f32[32,16], index: 2, kind: input, shape index: {}]
  %s3 = inlined_call_operand.vmem [shape: f32[32,16], index: 3, kind: input, shape index: {}]
  %s4 = inlined_call_operand.vmem [shape: f32[32,16], index: 4, kind: input, shape index: {}]
  %s5 = inlined_call_operand.vmem [shape: f32[16,128], index: 5, kind: input, shape index: {}]
  %s6 = inlined_call_operand.vmem [shape: f32[1,16], index: 6, kind: input, shape index: {}]
  %s7 = inlined_call_operand.vmem [shape: f32[1,16], index: 7, kind: input, shape index: {}]
  %s8 = inlined_call_operand.vmem [shape: f32[1,16], index: 8, kind: input, shape index: {}]
  %s9 = inlined_call_operand.vmem [shape: f32[1,128], index: 9, kind: input, shape index: {}]
  %s10 = inlined_call_operand.hbm [shape: f32[2,8,128], index: 10, kind: output, shape index: {}]
  %s11 = sld [smem:[#allocation0]]
  $region81: #{tpu_custom_call.1} parent=0
    _
  %s13 = ssub.s32 1, %s11
  %s14 = scalar_select 0, %s13, %s11
  $region1: #{tpu_custom_call.1} parent=0
    #allocation6 [shape = 'u8[8192]{0}', space=vmem, size = 0x2000, scoped, tag = 'output window, operand 0']
    #allocation7 [shape = 's32[2]{0}', space=sflag, size = 0x8, scoped, tag = 'scoped memory for tpu_custom_call.1']
    %15 = vsyncpa [#allocation7], 0
    %s16 = scalar_lea.sflag [#allocation7], 1
    %17 = vsyncpa %s16, 0
    loop: start=0, step=1, limit=4
    $region2: #{tpu_custom_call.1} parent=1 // loop_pre_header
      _
    $region3: #{tpu_custom_call.1} parent=1 // loop_header
      %s19 = sphi 0, %s23
      %p20 = scmp.ge.s32.totalorder %s19, 4
      %s26 = sphi 0, %s45
      %s27 = sphi 0, %s41
      %s28 = sphi 0, %s37
      %s29 = sphi 0, %s26
      %s30 = sphi 0, %s27
      %s31 = sphi 0, %s28
      %s32 = sphi 0, %s29
      %s33 = sphi 0, %s30
      %s34 = sphi 0, %s31
      %s50 = sphi 0, %s52
      %s53 = sphi 0, %s50
      %s54 = sphi 0, %s53
      %s70 = sphi 0, %s54
      %s78 = sphi 0, %s80
      %s81 = sphi 0, %s78
      %s82 = sphi 0, %s81
      %s98 = sphi 0, %s82
      %s102 = sphi 0, %s102
      %s104 = sphi 0, %s102
      %s105 = sphi 0, %s104
      %s119 = sphi 0, %s105
      %s123 = sphi 0, %s123
      %s125 = sphi 0, %s123
      %s126 = sphi 0, %s125
      %s140 = sphi 0, %s126
      %s144 = sphi 0, %s144
      %s146 = sphi 0, %s144
      %s147 = sphi 0, %s146
      %s161 = sphi 0, %s147
      %s165 = sphi 0, %s165
      %s167 = sphi 0, %s165
      %s168 = sphi 0, %s167
      %s182 = sphi 0, %s168
      %s186 = sphi 0, %s186
      %s188 = sphi 0, %s186
      %s189 = sphi 0, %s188
      %s203 = sphi 0, %s189
      %s207 = sphi 0, %s207
      %s209 = sphi 0, %s207
      %s210 = sphi 0, %s209
      %s224 = sphi 0, %s210
      %s228 = sphi 0, %s228
      %s230 = sphi 0, %s228
      %s231 = sphi 0, %s230
      %s245 = sphi 0, %s231
      %s249 = sphi 0, %s249
      %s251 = sphi 0, %s249
      %s252 = sphi 0, %s251
      %s266 = sphi 0, %s252
      %s274 = sphi 0, %s276
      %s277 = sphi 0, %s274
      %s278 = sphi 0, %s277
      %s294 = sphi 0, %s278
    $region4: #{tpu_custom_call.1} parent=1 // loop_header_branch
      %22 = sbr.rel (%p20) target = $region8
    $region5: #{tpu_custom_call.1} parent=1 // loop_body
      %s24 = ssub.s32 %s19, 1
      %s25 = ssub.s32 %s19, 2
      %s35 = sadd.s32 1, %s28
      %p36 = scmp.ge.s32.totalorder %s35, 1
      %s37 = scalar_select %p36, 0, %s35
      %s38 = sadd.s32 1, %s27
      %s39 = scalar_select %p36, %s38, %s27
      %p40 = scmp.ge.s32.totalorder %s39, 1
      %s41 = scalar_select %p40, 0, %s39
      %s42 = sadd.s32 1, %s26
      %s43 = scalar_select %p40, %s42, %s26
      %p44 = scmp.ge.s32.totalorder %s43, 2
      %s45 = scalar_select %p44, 0, %s43
      %s46 = ssub.s32 %s26, %s45
      %s47 = ssub.s32 %s27, %s41
      %s48 = sor.u32 %s46, %s47
      %p49 = scmp.eq.s32.totalorder %s48, 0
      %s51 = sadd.s32 %s50, 1
      %s52 = scalar_select %p49, %s50, %s51
      %p55 = pneg %p49
      %p56 = scmp.eq.s32.totalorder %s19, 1
      %p57 = por %p55, %p56
      %p58 = scmp.ne.s32.totalorder %s50, %s53
      %p59 = scmp.eq.s32.totalorder %s19, 0
      %p60 = por %p58, %p59
      %p61 = scmp.ne.s32.totalorder %s50, %s53
      %p62 = scmp.eq.s32.totalorder %s24, 1
      %p63 = por %p61, %p62
      %p64 = scmp.ne.s32.totalorder %s53, %s54
      %p65 = scmp.eq.s32.totalorder %s24, 0
      %p66 = por %p64, %p65
      %p67 = scmp.ne.s32.totalorder %s53, %s54
      %p68 = scmp.eq.s32.totalorder %s25, 1
      %p69 = por %p67, %p68
      %p71 = scmp.ne.s32.totalorder %s54, %s70
      %p72 = scmp.eq.s32.totalorder %s25, 0
      %p73 = por %p71, %p72
      %s74 = ssub.s32 %s26, %s45
      %s75 = ssub.s32 %s28, %s37
      %s76 = sor.u32 %s74, %s75
      %p77 = scmp.eq.s32.totalorder %s76, 0
      %s79 = sadd.s32 %s78, 1
      %s80 = scalar_select %p77, %s78, %s79
      %p83 = pneg %p77
      %p84 = scmp.eq.s32.totalorder %s19, 1
      %p85 = por %p83, %p84
      %p86 = scmp.ne.s32.totalorder %s78, %s81
      %p87 = scmp.eq.s32.totalorder %s19, 0
      %p88 = por %p86, %p87
      %p89 = scmp.ne.s32.totalorder %s78, %s81
      %p90 = scmp.eq.s32.totalorder %s24, 1
      %p91 = por %p89, %p90
      %p92 = scmp.ne.s32.totalorder %s81, %s82
      %p93 = scmp.eq.s32.totalorder %s24, 0
      %p94 = por %p92, %p93
      %p95 = scmp.ne.s32.totalorder %s81, %s82
      %p96 = scmp.eq.s32.totalorder %s25, 1
      %p97 = por %p95, %p96
      %p99 = scmp.ne.s32.totalorder %s82, %s98
      %p100 = scmp.eq.s32.totalorder %s25, 0
      %p101 = por %p99, %p100
      %s103 = sadd.s32 %s102, 1
      %p106 = scmp.eq.s32.totalorder %s19, 1
      %p107 = scmp.ne.s32.totalorder %s102, %s104
      %p108 = scmp.eq.s32.totalorder %s19, 0
      %p109 = por %p107, %p108
      %p110 = scmp.ne.s32.totalorder %s102, %s104
      %p111 = scmp.eq.s32.totalorder %s24, 1
      %p112 = por %p110, %p111
      %p113 = scmp.ne.s32.totalorder %s104, %s105
      %p114 = scmp.eq.s32.totalorder %s24, 0
      %p115 = por %p113, %p114
      %p116 = scmp.ne.s32.totalorder %s104, %s105
      %p117 = scmp.eq.s32.totalorder %s25, 1
      %p118 = por %p116, %p117
      %p120 = scmp.ne.s32.totalorder %s105, %s119
      %p121 = scmp.eq.s32.totalorder %s25, 0
      %p122 = por %p120, %p121
      %s124 = sadd.s32 %s123, 1
      %p127 = scmp.eq.s32.totalorder %s19, 1
      %p128 = scmp.ne.s32.totalorder %s123, %s125
      %p129 = scmp.eq.s32.totalorder %s19, 0
      %p130 = por %p128, %p129
      %p131 = scmp.ne.s32.totalorder %s123, %s125
      %p132 = scmp.eq.s32.totalorder %s24, 1
      %p133 = por %p131, %p132
      %p134 = scmp.ne.s32.totalorder %s125, %s126
      %p135 = scmp.eq.s32.totalorder %s24, 0
      %p136 = por %p134, %p135
      %p137 = scmp.ne.s32.totalorder %s125, %s126
      %p138 = scmp.eq.s32.totalorder %s25, 1
      %p139 = por %p137, %p138
      %p141 = scmp.ne.s32.totalorder %s126, %s140
      %p142 = scmp.eq.s32.totalorder %s25, 0
      %p143 = por %p141, %p142
      %s145 = sadd.s32 %s144, 1
      %p148 = scmp.eq.s32.totalorder %s19, 1
      %p149 = scmp.ne.s32.totalorder %s144, %s146
      %p150 = scmp.eq.s32.totalorder %s19, 0
      %p151 = por %p149, %p150
      %p152 = scmp.ne.s32.totalorder %s144, %s146
      %p153 = scmp.eq.s32.totalorder %s24, 1
      %p154 = por %p152, %p153
      %p155 = scmp.ne.s32.totalorder %s146, %s147
      %p156 = scmp.eq.s32.totalorder %s24, 0
      %p157 = por %p155, %p156
      %p158 = scmp.ne.s32.totalorder %s146, %s147
      %p159 = scmp.eq.s32.totalorder %s25, 1
      %p160 = por %p158, %p159
      %p162 = scmp.ne.s32.totalorder %s147, %s161
      %p163 = scmp.eq.s32.totalorder %s25, 0
      %p164 = por %p162, %p163
      %s166 = sadd.s32 %s165, 1
      %p169 = scmp.eq.s32.totalorder %s19, 1
      %p170 = scmp.ne.s32.totalorder %s165, %s167
      %p171 = scmp.eq.s32.totalorder %s19, 0
      %p172 = por %p170, %p171
      %p173 = scmp.ne.s32.totalorder %s165, %s167
      %p174 = scmp.eq.s32.totalorder %s24, 1
      %p175 = por %p173, %p174
      %p176 = scmp.ne.s32.totalorder %s167, %s168
      %p177 = scmp.eq.s32.totalorder %s24, 0
      %p178 = por %p176, %p177
      %p179 = scmp.ne.s32.totalorder %s167, %s168
      %p180 = scmp.eq.s32.totalorder %s25, 1
      %p181 = por %p179, %p180
      %p183 = scmp.ne.s32.totalorder %s168, %s182
      %p184 = scmp.eq.s32.totalorder %s25, 0
      %p185 = por %p183, %p184
      %s187 = sadd.s32 %s186, 1
      %p190 = scmp.eq.s32.totalorder %s19, 1
      %p191 = scmp.ne.s32.totalorder %s186, %s188
      %p192 = scmp.eq.s32.totalorder %s19, 0
      %p193 = por %p191, %p192
      %p194 = scmp.ne.s32.totalorder %s186, %s188
      %p195 = scmp.eq.s32.totalorder %s24, 1
      %p196 = por %p194, %p195
      %p197 = scmp.ne.s32.totalorder %s188, %s189
      %p198 = scmp.eq.s32.totalorder %s24, 0
      %p199 = por %p197, %p198
      %p200 = scmp.ne.s32.totalorder %s188, %s189
      %p201 = scmp.eq.s32.totalorder %s25, 1
      %p202 = por %p200, %p201
      %p204 = scmp.ne.s32.totalorder %s189, %s203
      %p205 = scmp.eq.s32.totalorder %s25, 0
      %p206 = por %p204, %p205
      %s208 = sadd.s32 %s207, 1
      %p211 = scmp.eq.s32.totalorder %s19, 1
      %p212 = scmp.ne.s32.totalorder %s207, %s209
      %p213 = scmp.eq.s32.totalorder %s19, 0
      %p214 = por %p212, %p213
      %p215 = scmp.ne.s32.totalorder %s207, %s209
      %p216 = scmp.eq.s32.totalorder %s24, 1
      %p217 = por %p215, %p216
      %p218 = scmp.ne.s32.totalorder %s209, %s210
      %p219 = scmp.eq.s32.totalorder %s24, 0
      %p220 = por %p218, %p219
      %p221 = scmp.ne.s32.totalorder %s209, %s210
      %p222 = scmp.eq.s32.totalorder %s25, 1
      %p223 = por %p221, %p222
      %p225 = scmp.ne.s32.totalorder %s210, %s224
      %p226 = scmp.eq.s32.totalorder %s25, 0
      %p227 = por %p225, %p226
      %s229 = sadd.s32 %s228, 1
      %p232 = scmp.eq.s32.totalorder %s19, 1
      %p233 = scmp.ne.s32.totalorder %s228, %s230
      %p234 = scmp.eq.s32.totalorder %s19, 0
      %p235 = por %p233, %p234
      %p236 = scmp.ne.s32.totalorder %s228, %s230
      %p237 = scmp.eq.s32.totalorder %s24, 1
      %p238 = por %p236, %p237
      %p239 = scmp.ne.s32.totalorder %s230, %s231
      %p240 = scmp.eq.s32.totalorder %s24, 0
      %p241 = por %p239, %p240
      %p242 = scmp.ne.s32.totalorder %s230, %s231
      %p243 = scmp.eq.s32.totalorder %s25, 1
      %p244 = por %p242, %p243
      %p246 = scmp.ne.s32.totalorder %s231, %s245
      %p247 = scmp.eq.s32.totalorder %s25, 0
      %p248 = por %p246, %p247
      %s250 = sadd.s32 %s249, 1
      %p253 = scmp.eq.s32.totalorder %s19, 1
      %p254 = scmp.ne.s32.totalorder %s249, %s251
      %p255 = scmp.eq.s32.totalorder %s19, 0
      %p256 = por %p254, %p255
      %p257 = scmp.ne.s32.totalorder %s249, %s251
      %p258 = scmp.eq.s32.totalorder %s24, 1
      %p259 = por %p257, %p258
      %p260 = scmp.ne.s32.totalorder %s251, %s252
      %p261 = scmp.eq.s32.totalorder %s24, 0
      %p262 = por %p260, %p261
      %p263 = scmp.ne.s32.totalorder %s251, %s252
      %p264 = scmp.eq.s32.totalorder %s25, 1
      %p265 = por %p263, %p264
      %p267 = scmp.ne.s32.totalorder %s252, %s266
      %p268 = scmp.eq.s32.totalorder %s25, 0
      %p269 = por %p267, %p268
      %s270 = ssub.s32 %s26, %s45
      %s271 = ssub.s32 %s27, %s41
      %s272 = sor.u32 %s270, %s271
      %p273 = scmp.eq.s32.totalorder %s272, 0
      %s275 = sadd.s32 %s274, 1
      %s276 = scalar_select %p273, %s274, %s275
      %p279 = pneg %p273
      %p280 = scmp.eq.s32.totalorder %s19, 1
      %p281 = por %p279, %p280
      %p282 = scmp.ne.s32.totalorder %s274, %s277
      %p283 = scmp.eq.s32.totalorder %s19, 0
      %p284 = por %p282, %p283
      %p285 = scmp.ne.s32.totalorder %s274, %s277
      %p286 = scmp.eq.s32.totalorder %s24, 1
      %p287 = por %p285, %p286
      %p288 = scmp.ne.s32.totalorder %s277, %s278
      %p289 = scmp.eq.s32.totalorder %s24, 0
      %p290 = por %p288, %p289
      %p291 = scmp.ne.s32.totalorder %s277, %s278
      %p292 = scmp.eq.s32.totalorder %s25, 1
      %p293 = por %p291, %p292
      %p295 = scmp.ne.s32.totalorder %s278, %s294
      %p296 = scmp.eq.s32.totalorder %s25, 0
      %p297 = por %p295, %p296
      %p298 = scmp.le.s32.totalorder 1, %s19
      %p299 = scmp.lt.s32.totalorder %s19, 3
      %p300 = pnand %p298, %p299
      %p301 = pneg %p300
      // Predicated region
      $region9: #{tpu_custom_call.1} parent=5 // pred_check
        _
      $region10: #{tpu_custom_call.1} parent=5 // pred_check_branch
        %303 = sbr.rel (%p300) target = $region12
      $region11: #{tpu_custom_call.1} parent=5 // pred_region
        %s304 = ssub.s32 %s19, 1
        // Predicated region
        $region13: #{tpu_custom_call.1} parent=11 // pred_check
          %p305 = pneg %p115
        $region14: #{tpu_custom_call.1} parent=11 // pred_check_branch
          %307 = sbr.rel (%p305) target = $region16
        $region15: #{tpu_custom_call.1} parent=11 // pred_region
          _
        $region16: #{tpu_custom_call.1} parent=11 // pred_fallthru
          _
        // Predicated region
        $region17: #{tpu_custom_call.1} parent=11 // pred_check
          %p308 = pneg %p136
        $region18: #{tpu_custom_call.1} parent=11 // pred_check_branch
          %310 = sbr.rel (%p308) target = $region20
        $region19: #{tpu_custom_call.1} parent=11 // pred_region
          _
        $region20: #{tpu_custom_call.1} parent=11 // pred_fallthru
          _
        // Predicated region
        $region21: #{tpu_custom_call.1} parent=11 // pred_check
          %p311 = pneg %p157
        $region22: #{tpu_custom_call.1} parent=11 // pred_check_branch
          %313 = sbr.rel (%p311) target = $region24
        $region23: #{tpu_custom_call.1} parent=11 // pred_region
          _
        $region24: #{tpu_custom_call.1} parent=11 // pred_fallthru
          _
        // Predicated region
        $region25: #{tpu_custom_call.1} parent=11 // pred_check
          %p314 = pneg %p178
        $region26: #{tpu_custom_call.1} parent=11 // pred_check_branch
          %316 = sbr.rel (%p314) target = $region28
        $region27: #{tpu_custom_call.1} parent=11 // pred_region
          _
        $region28: #{tpu_custom_call.1} parent=11 // pred_fallthru
          _
        // Predicated region
        $region29: #{tpu_custom_call.1} parent=11 // pred_check
          %p317 = pneg %p199
        $region30: #{tpu_custom_call.1} parent=11 // pred_check_branch
          %319 = sbr.rel (%p317) target = $region32
        $region31: #{tpu_custom_call.1} parent=11 // pred_region
          _
        $region32: #{tpu_custom_call.1} parent=11 // pred_fallthru
          _
        // Predicated region
        $region33: #{tpu_custom_call.1} parent=11 // pred_check
          %p320 = pneg %p220
        $region34: #{tpu_custom_call.1} parent=11 // pred_check_branch
          %322 = sbr.rel (%p320) target = $region36
        $region35: #{tpu_custom_call.1} parent=11 // pred_region
          _
        $region36: #{tpu_custom_call.1} parent=11 // pred_fallthru
          _
        // Predicated region
        $region37: #{tpu_custom_call.1} parent=11 // pred_check
          %p323 = pneg %p241
        $region38: #{tpu_custom_call.1} parent=11 // pred_check_branch
          %325 = sbr.rel (%p323) target = $region40
        $region39: #{tpu_custom_call.1} parent=11 // pred_region
          _
        $region40: #{tpu_custom_call.1} parent=11 // pred_fallthru
          _
        // Predicated region
        $region41: #{tpu_custom_call.1} parent=11 // pred_check
          %p326 = pneg %p262
        $region42: #{tpu_custom_call.1} parent=11 // pred_check_branch
          %328 = sbr.rel (%p326) target = $region44
        $region43: #{tpu_custom_call.1} parent=11 // pred_region
          _
        $region44: #{tpu_custom_call.1} parent=11 // pred_fallthru
          _
      $region12: #{tpu_custom_call.1} parent=5 // pred_fallthru
        _
      %p329 = scmp.lt.s32.totalorder %s19, 2
      // Predicated region
      $region45: #{tpu_custom_call.1} parent=5 // pred_check
        %p330 = pneg %p329
      $region46: #{tpu_custom_call.1} parent=5 // pred_check_branch
        %332 = sbr.rel (%p330) target = $region48
      $region47: #{tpu_custom_call.1} parent=5 // pred_region
        // Predicated region
        $region49: #{tpu_custom_call.1} parent=47 // pred_check
          %p333 = pneg %p60
        $region50: #{tpu_custom_call.1} parent=47 // pred_check_branch
          %335 = sbr.rel (%p333) target = $region52
        $region51: #{tpu_custom_call.1} parent=47 // pred_region
          %p336 = scmp.lt.s32.totalorder %s26, 1
          %s337 = scalar_select %p336, %s26, 1
          %p338 = scmp.lt.s32.totalorder %s27, 0
          %s339 = scalar_select %p338, %s27, 0
          %s340 = sadd.s32 %s339, %s337
          %s341 = smul.addr %s340, 8
          %s342 = scalar_lea.vmem %s0, %s341
        $region52: #{tpu_custom_call.1} parent=47 // pred_fallthru
          _
        // Predicated region
        $region53: #{tpu_custom_call.1} parent=47 // pred_check
          %p343 = pneg %p88
        $region54: #{tpu_custom_call.1} parent=47 // pred_check_branch
          %345 = sbr.rel (%p343) target = $region56
        $region55: #{tpu_custom_call.1} parent=47 // pred_region
          %p346 = scmp.lt.s32.totalorder %s26, 1
          %s347 = scalar_select %p346, %s26, 1
          %p348 = scmp.lt.s32.totalorder %s28, 0
          %s349 = scalar_select %p348, %s28, 0
          %s350 = sadd.s32 %s349, %s347
          %s351 = smul.addr %s350, 8
          %s352 = scalar_lea.vmem %s1, %s351
        $region56: #{tpu_custom_call.1} parent=47 // pred_fallthru
          _
      $region48: #{tpu_custom_call.1} parent=5 // pred_fallthru
        _
      %p353 = scmp.le.s32.totalorder 1, %s19
      %p354 = scmp.lt.s32.totalorder %s19, 3
      %p355 = pnand %p353, %p354
      %p356 = pneg %p355
      // Predicated region
      $region57: #{tpu_custom_call.1} parent=5 // pred_check
        _
      $region58: #{tpu_custom_call.1} parent=5 // pred_check_branch
        %358 = sbr.rel (%p355) target = $region60
      $region59: #{tpu_custom_call.1} parent=5 // pred_region
        %s359 = ssub.s32 %s19, 1
        %p360 = scmp.lt.s32.totalorder %s29, 1
        %s361 = scalar_select %p360, %s29, 1
        %p362 = scmp.lt.s32.totalorder %s30, 0
        %s363 = scalar_select %p362, %s30, 0
        %s364 = sadd.s32 %s363, %s361
        %s365 = smul.addr %s364, 8
        %s366 = scalar_lea.vmem %s0, %s365
        %p367 = pneg %p66
        %p368 = pneg %p63
        %p369 = scmp.lt.s32.totalorder %s29, 1
        %s370 = scalar_select %p369, %s29, 1
        %p371 = scmp.lt.s32.totalorder %s31, 0
        %s372 = scalar_select %p371, %s31, 0
        %s373 = sadd.s32 %s372, %s370
        %s374 = smul.addr %s373, 8
        %s375 = scalar_lea.vmem %s1, %s374
        %p376 = pneg %p94
        %p377 = pneg %p91
        %p378 = pneg %p115
        %p379 = pneg %p112
        %p380 = pneg %p136
        %p381 = pneg %p133
        %p382 = pneg %p157
        %p383 = pneg %p154
        %p384 = pneg %p178
        %p385 = pneg %p175
        %p386 = pneg %p199
        %p387 = pneg %p196
        %p388 = pneg %p220
        %p389 = pneg %p217
        %p390 = pneg %p241
        %p391 = pneg %p238
        %p392 = pneg %p262
        %p393 = pneg %p259
        %p394 = pneg %p290
        %p395 = pneg %p287
        %s396 = sand.u32 %s277, 1
        %s397 = scalar_lea.sflag [#allocation7], %s396
        %s398 = sand.u32 %s277, 1
        %s399 = smul.addr %s398, 8
        %s400 = scalar_lea.vmem [#allocation6], %s399
        %p401 = scmp.lt.s32.totalorder %s29, 1
        %s402 = scalar_select %p401, %s29, 1
        %p403 = scmp.lt.s32.totalorder %s30, 0
        %s404 = scalar_select %p403, %s30, 0
        %s405 = sadd.s32 %s404, %s402
        %s406 = smul.addr %s405, 8
        %s407 = scalar_lea.vmem %s0, %s406
        %p408 = scmp.lt.s32.totalorder %s29, 1
        %s409 = scalar_select %p408, %s29, 1
        %p410 = scmp.lt.s32.totalorder %s31, 0
        %s411 = scalar_select %p410, %s31, 0
        %s412 = sadd.s32 %s411, %s409
        %s413 = smul.addr %s412, 8
        %s414 = scalar_lea.vmem %s1, %s413
        %p415 = scmp.eq.s32.totalorder %s31, 0
        // Predicated region
        $region61: #{tpu_custom_call.1} parent=59 // pred_check
          %p416 = pneg %p415
        $region62: #{tpu_custom_call.1} parent=59 // pred_check_branch
          %418 = sbr.rel (%p416) target = $region64
        $region63: #{tpu_custom_call.1} parent=59 // pred_region
          %v419 = vld [vmem:[%s407] sm:$0xff]
          %v420 = vld [vmem:[%s2] sm:$0xff]
          %v421 = vld [vmem:[%s2 + $0x8] sm:$0xff]
          %v422 = vld [vmem:[%s2 + $0x10] sm:$0xff]
          %v423 = vld [vmem:[%s2 + $0x18] sm:$0xff]
          %v424 = vld [vmem:[%s6] sm:$0x1]
          %v426 = vperm.slane %v424, 0
          %vm428 = vcmask 261120
          %v430 = vsel %vm428, %v419, 0
          %432 = vmatpush.msra.mxu0 0.0
          %433 = vmatpush.msra.mxu0 0.0
          %434 = vmatpush.msra.mxu0 0.0
          %435 = vmatpush.msra.mxu0 0.0
          %436 = vmatpush.msra.mxu0 0.0
          %437 = vmatpush.msra.mxu0 0.0
          %438 = vmatpush.msra.mxu0 0.0
          %439 = vmatpush.msra.mxu0 0.0
          %440 = vmatpush.msra.mxu0 0.0
          %441 = vmatpush.msra.mxu0 0.0
          %442 = vmatpush.msra.mxu0 0.0
          %443 = vmatpush.msra.mxu0 0.0
          %444 = vmatpush.msra.mxu0 %v423
          %445 = vmatpush.msra.mxu0 %v422
          %446 = vmatpush.msra.mxu0 %v421
          %447 = vmatpush.msra.mxu0 %v420
          %448 = vmatmul.f32.gmra.mxu0 %v430
          %v449 = vpop.f32.mrf.mxu0
          %v450 = vadd.f32 %v426, %v449
          %451 = vdwg.mxu0
          %v452 = vmul.f32 %v450, 0.25
          %vm453 = vcmask 130048
          %454 = vst.msk [vmem:[#allocation2] sm:$0xff] %vm453, %v452
          %vm455 = vcmask 7168
          %456 = vst.msk [vmem:[#allocation3] sm:$0xff] %vm455, -inf
          %457 = vst.msk [vmem:[#allocation4] sm:$0xff] %vm455, 0.0
          %458 = vst.msk [vmem:[#allocation5] sm:$0xff] %vm453, 0.0
        $region64: #{tpu_custom_call.1} parent=59 // pred_fallthru
          _
        %v459 = vld [vmem:[%s414] sm:$0xff]
        %v460 = vld [vmem:[%s3] sm:$0xff]
        %v461 = vld [vmem:[%s3 + $0x8] sm:$0xff]
        %v462 = vld [vmem:[%s3 + $0x10] sm:$0xff]
        %v463 = vld [vmem:[%s3 + $0x18] sm:$0xff]
        %v464 = vld [vmem:[%s7] sm:$0x1]
        %v466 = vperm.slane %v464, 0
        %vm468 = vcmask 261120
        %v470 = vsel %vm468, %v459, 0
        %472 = vmatpush.msra.mxu0 0.0
        %473 = vmatpush.msra.mxu0 0.0
        %474 = vmatpush.msra.mxu0 0.0
        %475 = vmatpush.msra.mxu0 0.0
        %476 = vmatpush.msra.mxu0 0.0
        %477 = vmatpush.msra.mxu0 0.0
        %478 = vmatpush.msra.mxu0 0.0
        %479 = vmatpush.msra.mxu0 0.0
        %480 = vmatpush.msra.mxu0 0.0
        %481 = vmatpush.msra.mxu0 0.0
        %482 = vmatpush.msra.mxu0 0.0
        %483 = vmatpush.msra.mxu0 0.0
        %484 = vmatpush.msra.mxu0 %v463
        %485 = vmatpush.msra.mxu0 %v462
        %486 = vmatpush.msra.mxu0 %v461
        %487 = vmatpush.msra.mxu0 %v460
        %488 = vmatmul.f32.gmra.mxu0 %v470
        %v489 = vpop.f32.mrf.mxu0
        %v490 = vadd.f32 %v466, %v489
        %491 = vdwg.mxu0
        %v492 = vld [vmem:[%s4] sm:$0xff]
        %v493 = vld [vmem:[%s4 + $0x8] sm:$0xff]
        %v494 = vld [vmem:[%s4 + $0x10] sm:$0xff]
        %v495 = vld [vmem:[%s4 + $0x18] sm:$0xff]
        %v496 = vld [vmem:[%s8] sm:$0x1]
        %v498 = vperm.slane %v496, 0
        %500 = vmatpush.msra.mxu0 0.0
        %501 = vmatpush.msra.mxu0 0.0
        %502 = vmatpush.msra.mxu0 0.0
        %503 = vmatpush.msra.mxu0 0.0
        %504 = vmatpush.msra.mxu0 0.0
        %505 = vmatpush.msra.mxu0 0.0
        %506 = vmatpush.msra.mxu0 0.0
        %507 = vmatpush.msra.mxu0 0.0
        %508 = vmatpush.msra.mxu0 0.0
        %509 = vmatpush.msra.mxu0 0.0
        %510 = vmatpush.msra.mxu0 0.0
        %511 = vmatpush.msra.mxu0 0.0
        %512 = vmatpush.msra.mxu0 %v495
        %513 = vmatpush.msra.mxu0 %v494
        %514 = vmatpush.msra.mxu0 %v493
        %515 = vmatpush.msra.mxu0 %v492
        %516 = vmatmul.f32.gmra.mxu0 %v470
        %v517 = vpop.f32.mrf.mxu0
        %v518 = vadd.f32 %v498, %v517
        %519 = vdwg.mxu0
        %v520 = vld [vmem:[#allocation2] sm:$0xff]
        %vm521 = vcmask 130048
        %v523 = vsel %vm521, %v520, 0
        %v526 = vsel %vm521, %v490, 0
        %528 = vmatpush.xpose.msra.mxu0 0.0
        %529 = vmatpush.xpose.msra.mxu0 0.0
        %530 = vmatpush.xpose.msra.mxu0 0.0
        %531 = vmatpush.xpose.msra.mxu0 0.0
        %532 = vmatpush.xpose.msra.mxu0 0.0
        %533 = vmatpush.xpose.msra.mxu0 0.0
        %534 = vmatpush.xpose.msra.mxu0 0.0
        %535 = vmatpush.xpose.msra.mxu0 0.0
        %536 = vmatpush.xpose.msra.mxu0 0.0
        %537 = vmatpush.xpose.msra.mxu0 0.0
        %538 = vmatpush.xpose.msra.mxu0 0.0
        %539 = vmatpush.xpose.msra.mxu0 0.0
        %540 = vmatpush.xpose.msra.mxu0 0.0
        %541 = vmatpush.xpose.msra.mxu0 0.0
        %542 = vmatpush.xpose.msra.mxu0 0.0
        %543 = vmatpush.xpose.msra.mxu0 %v526
        %544 = vmatmul.f32.gmra.mxu0 %v523
        %v545 = vpop.f32.mrf.mxu0
        %v546 = vadd.f32 0.0, %v545
        %547 = vdwg.mxu0
        %v548 = vld [vmem:[#allocation3] sm:$0xff]
        %vm549 = vcmask 64512
        %v550 = vsel %vm549, %v546, -inf
        %551 = vmax.xlane.f32.xlu0 %v550
        %v552 = vpop.xlane.xlu0 %551
        %v553 = vmax.f32 %v548, %v552
        %v554 = vsub.f32 %v548, %v553
        %v555 = vmul.f32 %v554, 1.442695
        %v556 = vpow.pop %v555
        %558 = vset.pattern.permute.xlu0 0
        %559 = vperm.xlu0 %558, %v553
        %v560 = vpop.permute.xlu0 %559
        %v562 = vsub.f32 %v546, %v560
        %v563 = vmul.f32 %v562, 1.442695
        %v564 = vpow.pop %v563
        %v565 = vld [vmem:[#allocation4] sm:$0xff]
        %v566 = vmul.f32 %v556, %v565
        %v567 = vsel %vm549, %v564, 0.0
        %568 = vadd.xlane.f32.xlu0 %v567
        %v569 = vpop.xlane.xlu0 %568
        %v570 = vadd.f32 %v566, %v569
        %vm571 = vcmask 7168
        %572 = vst.msk [vmem:[#allocation4] sm:$0xff] %vm571, %v570
        %v573 = vld [vmem:[#allocation5] sm:$0xff]
        %575 = vset.pattern.permute.xlu0 0
        %576 = vperm.xlu0 %575, %v556
        %v577 = vpop.permute.xlu0 %576
        %v579 = vmul.f32 %v577, %v573
        %v581 = vsel %vm549, %v564, 0
        %583 = vmatpush.msra.mxu0 0.0
        %584 = vmatpush.msra.mxu0 0.0
        %585 = vmatpush.msra.mxu0 0.0
        %586 = vmatpush.msra.mxu0 0.0
        %587 = vmatpush.msra.mxu0 0.0
        %588 = vmatpush.msra.mxu0 0.0
        %589 = vmatpush.msra.mxu0 0.0
        %590 = vmatpush.msra.mxu0 0.0
        %591 = vmatpush.msra.mxu0 0.0
        %592 = vmatpush.msra.mxu0 0.0
        %593 = vmatpush.msra.mxu0 0.0
        %594 = vmatpush.msra.mxu0 0.0
        %595 = vmatpush.msra.mxu0 0.0
        %596 = vmatpush.msra.mxu0 0.0
        %597 = vmatpush.msra.mxu0 0.0
        %598 = vmatpush.msra.mxu0 %v518
        %599 = vmatmul.f32.gmra.mxu0 %v581
        %v600 = vpop.f32.mrf.mxu0
        %v601 = vadd.f32 0.0, %v600
        %602 = vdwg.mxu0
        %v603 = vadd.f32 %v579, %v601
        %604 = vst.msk [vmem:[#allocation5] sm:$0xff] %vm521, %v603
        %605 = vst.msk [vmem:[#allocation3] sm:$0xff] %vm571, %v553
        // Predicated region
        $region65: #{tpu_custom_call.1} parent=59 // pred_check
          %p606 = pneg %p415
        $region66: #{tpu_custom_call.1} parent=59 // pred_check_branch
          %608 = sbr.rel (%p606) target = $region68
        $region67: #{tpu_custom_call.1} parent=59 // pred_region
          %v609 = vld [vmem:[#allocation5] sm:$0xff]
          %v610 = vld [vmem:[#allocation4] sm:$0xff]
          %v611 = vrcp.pop %v610
          %613 = vset.pattern.permute.xlu0 0
          %614 = vperm.xlu0 %613, %v611
          %v615 = vpop.permute.xlu0 %614
          %v617 = vmul.f32 %v609, %v615
          %v618 = vld [vmem:[%s5] sm:$0xff]
          %v619 = vld [vmem:[%s5 + $0x8] sm:$0xff]
          %v620 = vld [vmem:[%s9] sm:$0x1]
          %v622 = vperm.slane %v620, 0
          %v625 = vsel %vm521, %v617, 0
          %627 = vmatpush.msra.mxu0 0.0
          %628 = vmatpush.msra.mxu0 0.0
          %629 = vmatpush.msra.mxu0 0.0
          %630 = vmatpush.msra.mxu0 0.0
          %631 = vmatpush.msra.mxu0 0.0
          %632 = vmatpush.msra.mxu0 0.0
          %633 = vmatpush.msra.mxu0 0.0
          %634 = vmatpush.msra.mxu0 0.0
          %635 = vmatpush.msra.mxu0 0.0
          %636 = vmatpush.msra.mxu0 0.0
          %637 = vmatpush.msra.mxu0 0.0
          %638 = vmatpush.msra.mxu0 0.0
          %639 = vmatpush.msra.mxu0 0.0
          %640 = vmatpush.msra.mxu0 0.0
          %641 = vmatpush.msra.mxu0 %v619
          %642 = vmatpush.msra.mxu0 %v618
          %643 = vmatmul.f32.gmra.mxu0 %v625
          %v644 = vpop.f32.mrf.mxu0
          %v645 = vadd.f32 %v622, %v644
          %646 = vdwg.mxu0
          %647 = vst [vmem:[%s400] sm:$0xff] %v645
        $region68: #{tpu_custom_call.1} parent=59 // pred_fallthru
          _
        %s648 = sand.u32 %s277, 1
        %s649 = scalar_lea.sflag [#allocation7], %s648
        %s650 = sand.u32 %s277, 1
        %s651 = smul.addr %s650, 8
        %s652 = scalar_lea.vmem [#allocation6], %s651
        // Predicated region
        $region69: #{tpu_custom_call.1} parent=59 // pred_check
          %p653 = pneg %p287
        $region70: #{tpu_custom_call.1} parent=59 // pred_check_branch
          %655 = sbr.rel (%p653) target = $region72
        $region71: #{tpu_custom_call.1} parent=59 // pred_region
          %657 = vsyncadd %s649, 0
          %s658 = sadd.s32 %s30, %s29
          %s659 = smul.addr %s658, 8
          %s660 = scalar_lea.hbm %s10, %s659
          %s662 = sshll.u32 %s652, 4
          %s663 = int_to_ptr.vmem [resolvable:$true] %s662
          %s664 = sshll.u32 %s660, 4
          %s665 = int_to_ptr.hbm [resolvable:$true] %s664
          %667 = dma.vmem_to_hbm [thread:$0]  %s663, 128, %s665, %s649
        $region72: #{tpu_custom_call.1} parent=59 // pred_fallthru
          _
      $region60: #{tpu_custom_call.1} parent=5 // pred_fallthru
        _
      %p668 = scmp.le.s32.totalorder 2, %s19
      // Predicated region
      $region73: #{tpu_custom_call.1} parent=5 // pred_check
        %p669 = pneg %p668
      $region74: #{tpu_custom_call.1} parent=5 // pred_check_branch
        %671 = sbr.rel (%p669) target = $region76
      $region75: #{tpu_custom_call.1} parent=5 // pred_region
        %s672 = ssub.s32 %s19, 2
        // Predicated region
        $region77: #{tpu_custom_call.1} parent=75 // pred_check
          %p673 = pneg %p293
        $region78: #{tpu_custom_call.1} parent=75 // pred_check_branch
          %675 = sbr.rel (%p673) target = $region80
        $region79: #{tpu_custom_call.1} parent=75 // pred_region
          %s676 = sand.u32 %s278, 1
          %s677 = scalar_lea.sflag [#allocation7], %s676
          %s678 = sand.u32 %s278, 1
          %s679 = smul.addr %s678, 8
          %s680 = scalar_lea.vmem [#allocation6], %s679
          %682 = dma.done %s677, 128
        $region80: #{tpu_custom_call.1} parent=75 // pred_fallthru
          _
      $region76: #{tpu_custom_call.1} parent=5 // pred_fallthru
        _
    $region6: #{tpu_custom_call.1} parent=1 // loop_footer
      %s23 = sadd.s32 1, %s19
    $region7: #{tpu_custom_call.1} parent=1 // loop_footer_branch
      %18 = sbr.rel target = $region3
    $region8: #{tpu_custom_call.1} parent=1 // loop_exit
      _
    %683 = vsyncpa [#allocation7], 1
    %s684 = scalar_lea.sflag [#allocation7], 1
    %685 = vsyncpa %s684, 1

</llo_original>
